<compile_context>
chip_gen: v7x
topology: tpu7x:2x2x1
jax: 0.10.0
libtpu: 0.0.40
codegen_flags: <defaults>
</compile_context>

<pallas_src>
import jax
import jax.numpy as jnp
from jax.experimental import pallas as pl
from jax.experimental.pallas import tpu as pltpu


def _make_conv_bn_kernel(H, W, Cin):
    HW = H * W
    # Tap order t = ky*3 + kx must match the weight-matrix column order.
    taps = [(ky - 1, kx - 1) for ky in range(3) for kx in range(3)]

    def kernel(x_ref, w_ref, shift_ref, maskx_ref, o_ref, patches_ref):
        # x_ref:       (NB, Cin, H*W)   lane-dense flattened NCHW input block
        # w_ref:       (Cout, 9*Cin)    BN-scale-folded im2col weight
        # shift_ref:   (Cout, 1)        folded BN shift
        # maskx_ref:   (9*Cin, H*W)     0/1 boundary masks (per tap, per Cin row)
        # o_ref:       (NB, Cout, H*W)  lane-dense channel-major output block
        # patches_ref: (9*Cin, H*W)     VMEM scratch for the im2col matrix
        nb = x_ref.shape[0]
        w = w_ref[...]
        shift = shift_ref[...]
        maskx = maskx_ref[...]
        for b in range(nb):                      # static, small unrolled loop
            xb = x_ref[b]                        # (Cin, H*W)
            for t, (dy, dx) in enumerate(taps):
                amt = (-(dy * W + dx)) % HW      # rolled[p] = xb[p + dy*W + dx]
                rolled = xb if amt == 0 else pltpu.roll(xb, shift=amt, axis=1)
                patches_ref[pl.ds(t * Cin, Cin), :] = rolled
            # One multiply zeroes every out-of-image / wrapped tap position.
            patches = patches_ref[...] * maskx
            # Single MXU matmul: (Cout, 9*Cin) @ (9*Cin, H*W), f32 accumulate.
            acc = jnp.dot(w, patches, preferred_element_type=jnp.float32)
            o_ref[b] = (acc + shift).astype(o_ref.dtype)

    return kernel


def projector_forward(x_nchw, weight_oihw, gamma, beta, running_mean,
                      running_var, eps=1e-5, vmem_budget_bytes=8 * 1024 * 1024):
    """Forward pass matching the PyTorch `projector` module.

    x_nchw:      (N, Cin, H, W)    float32
    weight_oihw: (Cout, Cin, 3, 3) float32  (nn.Conv2d weight layout)
    gamma/beta/running_mean/running_var: (Cout,)
    Returns (N, Cout, H, W) float32.
    """
    N, Cin, H, W = x_nchw.shape
    Cout = weight_oihw.shape[0]
    HW = H * W

    # ---- one-time parameter prep (tiny; no per-call HBM passes over x) ----
    scale = gamma / jnp.sqrt(running_var + eps)                      # (Cout,)
    shift = (beta - running_mean * scale).reshape(Cout, 1).astype(jnp.float32)
    # (Cout, Cin, 3, 3) -> (Cout, 3, 3, Cin) -> (Cout, 9*Cin), fold BN scale in.
    w_mat = (jnp.transpose(weight_oihw, (0, 2, 3, 1)).reshape(Cout, 9 * Cin)
             * scale[:, None]).astype(jnp.float32)

    # Per-tap validity masks implementing the pad=1 zero halo, repeated per
    # input channel so the assembled im2col matrix is masked in one op.
    pos = jnp.arange(HW, dtype=jnp.int32)
    yy, xx = pos // W, pos % W
    rows = []
    for ky in range(3):
        for kx in range(3):
            dy, dx = ky - 1, kx - 1
            m = ((yy + dy >= 0) & (yy + dy < H) &
                 (xx + dx >= 0) & (xx + dx < W)).astype(jnp.float32)
            rows.append(m)
    mask9 = jnp.stack(rows, axis=0)                                  # (9, HW)
    maskx = jnp.repeat(mask9, Cin, axis=0)                           # (9*Cin, HW)

    # Free contiguous reshape: NCHW -> (N, Cin, H*W); lanes = H*W (multiple of 128).
    x_flat = x_nchw.reshape(N, Cin, HW).astype(jnp.float32)

    # Batch elements per grid step: biggest divisor of N fitting the VMEM budget.
    per_batch = 2 * (Cin + Cout) * HW * 4          # double-buffered in + out
    nb = max(1, min(N, vmem_budget_bytes // max(per_batch, 1)))
    while N % nb:
        nb -= 1

    kernel = _make_conv_bn_kernel(H, W, Cin)
    out_flat = pl.pallas_call(
        kernel,
        out_shape=jax.ShapeDtypeStruct((N, Cout, HW), jnp.float32),
        grid_spec=pltpu.PrefetchScalarGridSpec(
            num_scalar_prefetch=0,
            grid=(N // nb,),
            in_specs=[
                pl.BlockSpec((nb, Cin, HW), lambda g: (g, 0, 0)),
                pl.BlockSpec((Cout, 9 * Cin), lambda g: (0, 0)),
                pl.BlockSpec((Cout, 1), lambda g: (0, 0)),
                pl.BlockSpec((9 * Cin, HW), lambda g: (0, 0)),
            ],
            out_specs=pl.BlockSpec((nb, Cout, HW), lambda g: (g, 0, 0)),
            scratch_shapes=[pltpu.VMEM((9 * Cin, HW), jnp.float32)],
        ),
        compiler_params=pltpu.CompilerParams(
            dimension_semantics=("parallel",)),
    )(x_flat, w_mat, shift, maskx)

    # Free reshape back to NCHW (kernel output is already channel-major).
    return out_flat.reshape(N, Cout, H, W)


def _reference(x_nchw, weight_oihw, gamma, beta, running_mean, running_var,
               eps=1e-5):
    y = jax.lax.conv_general_dilated(
        x_nchw, weight_oihw, window_strides=(1, 1), padding=((1, 1), (1, 1)),
        dimension_numbers=("NCHW", "OIHW", "NCHW"))
    scale = (gamma / jnp.sqrt(running_var + eps)).reshape(1, -1, 1, 1)
    shift = (beta - running_mean * gamma / jnp.sqrt(running_var + eps)).reshape(
        1, -1, 1, 1)
    return y * scale + shift


if __name__ == "__main__":
    # Small deterministic shapes: batch=2, in_channel=4, out_channel=8, 16x16.
    N, Cin, Cout, H, W = 2, 4, 8, 16, 16
    key = jax.random.PRNGKey(0)
    k_x, k_w, k_g, k_b, k_m, k_v = jax.random.split(key, 6)

    x = jax.random.normal(k_x, (N, Cin, H, W), dtype=jnp.float32)
    weight = 0.1 * jax.random.normal(k_w, (Cout, Cin, 3, 3), dtype=jnp.float32)
    gamma = 1.0 + 0.1 * jax.random.normal(k_g, (Cout,), dtype=jnp.float32)
    beta = 0.1 * jax.random.normal(k_b, (Cout,), dtype=jnp.float32)
    running_mean = 0.1 * jax.random.normal(k_m, (Cout,), dtype=jnp.float32)
    running_var = jnp.abs(1.0 + 0.1 * jax.random.normal(k_v, (Cout,),
                                                        dtype=jnp.float32))

    out = projector_forward(x, weight, gamma, beta, running_mean, running_var)
    out = jax.block_until_ready(out)

    ref = _reference(x, weight, gamma, beta, running_mean, running_var)
    assert out.shape == (N, Cout, H, W)
    assert jnp.allclose(out, ref, atol=1e-4, rtol=1e-4), "mismatch vs reference"

    print("KERNEL_OK")
</pallas_src>

<mosaic_0001>
module attributes {stable_mosaic.version = 11 : i64} {
  func.func @kernel(%arg0: i32, %arg1: memref<2x4x256xf32, #tpu.memory_space<vmem>>, %arg2: memref<8x36xf32, #tpu.memory_space<vmem>>, %arg3: memref<8x1xf32, #tpu.memory_space<vmem>>, %arg4: memref<36x256xf32, #tpu.memory_space<vmem>>, %arg5: memref<2x8x256xf32, #tpu.memory_space<vmem>>, %arg6: memref<36x256xf32, #tpu.memory_space<vmem>>) attributes {dimension_semantics = [#tpu.dimension_semantics<parallel>], iteration_bounds = array<i64: 1>, scalar_prefetch = 0 : i64, scratch_operands = 1 : i64, tpu.core_type = #tpu.core_type<tc>, window_params = [{transform_indices = @transform_0, window_bounds = array<i64: 2, 4, 256>}, {pipeline_mode = #tpu.pipeline_mode<synchronous>, transform_indices = @transform_1, window_bounds = array<i64: 8, 36>}, {pipeline_mode = #tpu.pipeline_mode<synchronous>, transform_indices = @transform_2, window_bounds = array<i64: 8, 1>}, {pipeline_mode = #tpu.pipeline_mode<synchronous>, transform_indices = @transform_3, window_bounds = array<i64: 36, 256>}, {transform_indices = @transform_4, window_bounds = array<i64: 2, 8, 256>}]} {
    %c0 = arith.constant 0 : index
    %c0_0 = arith.constant 0 : index
    %0 = vector.load %arg2[%c0, %c0_0] : memref<8x36xf32, #tpu.memory_space<vmem>>, vector<8x36xf32>
    %c0_1 = arith.constant 0 : index
    %c0_2 = arith.constant 0 : index
    %1 = vector.load %arg3[%c0_1, %c0_2] : memref<8x1xf32, #tpu.memory_space<vmem>>, vector<8x1xf32>
    %c0_3 = arith.constant 0 : index
    %c0_4 = arith.constant 0 : index
    %2 = vector.load %arg4[%c0_3, %c0_4] : memref<36x256xf32, #tpu.memory_space<vmem>>, vector<36x256xf32>
    %c0_5 = arith.constant 0 : index
    %c0_6 = arith.constant 0 : index
    %c0_7 = arith.constant 0 : index
    %3 = vector.load %arg1[%c0_5, %c0_6, %c0_7] : memref<2x4x256xf32, #tpu.memory_space<vmem>>, vector<1x4x256xf32>
    %4 = vector.shape_cast %3 : vector<1x4x256xf32> to vector<4x256xf32>
    %c17_i32 = arith.constant 17 : i32
    %5 = tpu.dynamic_rotate %4 by %c17_i32 dim 1 : vector<4x256xf32>, i32 -> vector<4x256xf32>
    %c0_8 = arith.constant 0 : index
    %c0_9 = arith.constant 0 : index
    %6 = vector.load %arg6[%c0_8, %c0_9] : memref<36x256xf32, #tpu.memory_space<vmem>>, vector<4x256xf32>
    tpu.vector_store %arg6[%c0_8, %c0_9], %5 {strides = array<i32>} : memref<36x256xf32, #tpu.memory_space<vmem>>, vector<4x256xf32>,
    %c16_i32 = arith.constant 16 : i32
    %7 = tpu.dynamic_rotate %4 by %c16_i32 dim 1 : vector<4x256xf32>, i32 -> vector<4x256xf32>
    %c4 = arith.constant 4 : index
    %c0_10 = arith.constant 0 : index
    %8 = vector.load %arg6[%c4, %c0_10] : memref<36x256xf32, #tpu.memory_space<vmem>>, vector<4x256xf32>
    tpu.vector_store %arg6[%c4, %c0_10], %7 {strides = array<i32>} : memref<36x256xf32, #tpu.memory_space<vmem>>, vector<4x256xf32>,
    %c15_i32 = arith.constant 15 : i32
    %9 = tpu.dynamic_rotate %4 by %c15_i32 dim 1 : vector<4x256xf32>, i32 -> vector<4x256xf32>
    %c8 = arith.constant 8 : index
    %c0_11 = arith.constant 0 : index
    %10 = vector.load %arg6[%c8, %c0_11] : memref<36x256xf32, #tpu.memory_space<vmem>>, vector<4x256xf32>
    tpu.vector_store %arg6[%c8, %c0_11], %9 {strides = array<i32>} : memref<36x256xf32, #tpu.memory_space<vmem>>, vector<4x256xf32>,
    %c1_i32 = arith.constant 1 : i32
    %11 = tpu.dynamic_rotate %4 by %c1_i32 dim 1 : vector<4x256xf32>, i32 -> vector<4x256xf32>
    %c12 = arith.constant 12 : index
    %c0_12 = arith.constant 0 : index
    %12 = vector.load %arg6[%c12, %c0_12] : memref<36x256xf32, #tpu.memory_space<vmem>>, vector<4x256xf32>
    tpu.vector_store %arg6[%c12, %c0_12], %11 {strides = array<i32>} : memref<36x256xf32, #tpu.memory_space<vmem>>, vector<4x256xf32>,
    %c16 = arith.constant 16 : index
    %c0_13 = arith.constant 0 : index
    %13 = vector.load %arg6[%c16, %c0_13] : memref<36x256xf32, #tpu.memory_space<vmem>>, vector<4x256xf32>
    tpu.vector_store %arg6[%c16, %c0_13], %4 {strides = array<i32>} : memref<36x256xf32, #tpu.memory_space<vmem>>, vector<4x256xf32>,
    %c255_i32 = arith.constant 255 : i32
    %14 = tpu.dynamic_rotate %4 by %c255_i32 dim 1 : vector<4x256xf32>, i32 -> vector<4x256xf32>
    %c20 = arith.constant 20 : index
    %c0_14 = arith.constant 0 : index
    %15 = vector.load %arg6[%c20, %c0_14] : memref<36x256xf32, #tpu.memory_space<vmem>>, vector<4x256xf32>
    tpu.vector_store %arg6[%c20, %c0_14], %14 {strides = array<i32>} : memref<36x256xf32, #tpu.memory_space<vmem>>, vector<4x256xf32>,
    %c241_i32 = arith.constant 241 : i32
    %16 = tpu.dynamic_rotate %4 by %c241_i32 dim 1 : vector<4x256xf32>, i32 -> vector<4x256xf32>
    %c24 = arith.constant 24 : index
    %c0_15 = arith.constant 0 : index
    %17 = vector.load %arg6[%c24, %c0_15] : memref<36x256xf32, #tpu.memory_space<vmem>>, vector<4x256xf32>
    tpu.vector_store %arg6[%c24, %c0_15], %16 {strides = array<i32>} : memref<36x256xf32, #tpu.memory_space<vmem>>, vector<4x256xf32>,
    %c240_i32 = arith.constant 240 : i32
    %18 = tpu.dynamic_rotate %4 by %c240_i32 dim 1 : vector<4x256xf32>, i32 -> vector<4x256xf32>
    %c28 = arith.constant 28 : index
    %c0_16 = arith.constant 0 : index
    %19 = vector.load %arg6[%c28, %c0_16] : memref<36x256xf32, #tpu.memory_space<vmem>>, vector<4x256xf32>
    tpu.vector_store %arg6[%c28, %c0_16], %18 {strides = array<i32>} : memref<36x256xf32, #tpu.memory_space<vmem>>, vector<4x256xf32>,
    %c239_i32 = arith.constant 239 : i32
    %20 = tpu.dynamic_rotate %4 by %c239_i32 dim 1 : vector<4x256xf32>, i32 -> vector<4x256xf32>
    %c32 = arith.constant 32 : index
    %c0_17 = arith.constant 0 : index
    %21 = vector.load %arg6[%c32, %c0_17] : memref<36x256xf32, #tpu.memory_space<vmem>>, vector<4x256xf32>
    tpu.vector_store %arg6[%c32, %c0_17], %20 {strides = array<i32>} : memref<36x256xf32, #tpu.memory_space<vmem>>, vector<4x256xf32>,
    %c0_18 = arith.constant 0 : index
    %c0_19 = arith.constant 0 : index
    %22 = vector.load %arg6[%c0_18, %c0_19] : memref<36x256xf32, #tpu.memory_space<vmem>>, vector<36x256xf32>
    %23 = arith.mulf %22, %2 : vector<36x256xf32>
    %cst = arith.constant dense<0.000000e+00> : vector<8x256xf32>
    %24 = tpu.matmul %0, %23, %cst {dimension_numbers = #tpu.dot_dimension_numbers<[1], [0], [0], [1], [0, 0, 1, 1], [], []>} : vector<8x36xf32>, vector<36x256xf32>, vector<8x256xf32> -> vector<8x256xf32>
    %25 = vector.broadcast %1 : vector<8x1xf32> to vector<8x256xf32>
    %26 = arith.addf %24, %25 : vector<8x256xf32>
    %c0_20 = arith.constant 0 : index
    %c0_21 = arith.constant 0 : index
    %c0_22 = arith.constant 0 : index
    %27 = vector.load %arg5[%c0_20, %c0_21, %c0_22] : memref<2x8x256xf32, #tpu.memory_space<vmem>>, vector<1x8x256xf32>
    %28 = vector.shape_cast %27 : vector<1x8x256xf32> to vector<8x256xf32>
    %29 = vector.shape_cast %26 : vector<8x256xf32> to vector<1x8x256xf32>
    tpu.vector_store %arg5[%c0_20, %c0_21, %c0_22], %29 {strides = array<i32>} : memref<2x8x256xf32, #tpu.memory_space<vmem>>, vector<1x8x256xf32>,
    %c1 = arith.constant 1 : index
    %c0_23 = arith.constant 0 : index
    %c0_24 = arith.constant 0 : index
    %30 = vector.load %arg1[%c1, %c0_23, %c0_24] : memref<2x4x256xf32, #tpu.memory_space<vmem>>, vector<1x4x256xf32>
    %31 = vector.shape_cast %30 : vector<1x4x256xf32> to vector<4x256xf32>
    %c17_i32_25 = arith.constant 17 : i32
    %32 = tpu.dynamic_rotate %31 by %c17_i32_25 dim 1 : vector<4x256xf32>, i32 -> vector<4x256xf32>
    %c0_26 = arith.constant 0 : index
    %c0_27 = arith.constant 0 : index
    %33 = vector.load %arg6[%c0_26, %c0_27] : memref<36x256xf32, #tpu.memory_space<vmem>>, vector<4x256xf32>
    tpu.vector_store %arg6[%c0_26, %c0_27], %32 {strides = array<i32>} : memref<36x256xf32, #tpu.memory_space<vmem>>, vector<4x256xf32>,
    %c16_i32_28 = arith.constant 16 : i32
    %34 = tpu.dynamic_rotate %31 by %c16_i32_28 dim 1 : vector<4x256xf32>, i32 -> vector<4x256xf32>
    %c4_29 = arith.constant 4 : index
    %c0_30 = arith.constant 0 : index
    %35 = vector.load %arg6[%c4_29, %c0_30] : memref<36x256xf32, #tpu.memory_space<vmem>>, vector<4x256xf32>
    tpu.vector_store %arg6[%c4_29, %c0_30], %34 {strides = array<i32>} : memref<36x256xf32, #tpu.memory_space<vmem>>, vector<4x256xf32>,
    %c15_i32_31 = arith.constant 15 : i32
    %36 = tpu.dynamic_rotate %31 by %c15_i32_31 dim 1 : vector<4x256xf32>, i32 -> vector<4x256xf32>
    %c8_32 = arith.constant 8 : index
    %c0_33 = arith.constant 0 : index
    %37 = vector.load %arg6[%c8_32, %c0_33] : memref<36x256xf32, #tpu.memory_space<vmem>>, vector<4x256xf32>
    tpu.vector_store %arg6[%c8_32, %c0_33], %36 {strides = array<i32>} : memref<36x256xf32, #tpu.memory_space<vmem>>, vector<4x256xf32>,
    %c1_i32_34 = arith.constant 1 : i32
    %38 = tpu.dynamic_rotate %31 by %c1_i32_34 dim 1 : vector<4x256xf32>, i32 -> vector<4x256xf32>
    %c12_35 = arith.constant 12 : index
    %c0_36 = arith.constant 0 : index
    %39 = vector.load %arg6[%c12_35, %c0_36] : memref<36x256xf32, #tpu.memory_space<vmem>>, vector<4x256xf32>
    tpu.vector_store %arg6[%c12_35, %c0_36], %38 {strides = array<i32>} : memref<36x256xf32, #tpu.memory_space<vmem>>, vector<4x256xf32>,
    %c16_37 = arith.constant 16 : index
    %c0_38 = arith.constant 0 : index
    %40 = vector.load %arg6[%c16_37, %c0_38] : memref<36x256xf32, #tpu.memory_space<vmem>>, vector<4x256xf32>
    tpu.vector_store %arg6[%c16_37, %c0_38], %31 {strides = array<i32>} : memref<36x256xf32, #tpu.memory_space<vmem>>, vector<4x256xf32>,
    %c255_i32_39 = arith.constant 255 : i32
    %41 = tpu.dynamic_rotate %31 by %c255_i32_39 dim 1 : vector<4x256xf32>, i32 -> vector<4x256xf32>
    %c20_40 = arith.constant 20 : index
    %c0_41 = arith.constant 0 : index
    %42 = vector.load %arg6[%c20_40, %c0_41] : memref<36x256xf32, #tpu.memory_space<vmem>>, vector<4x256xf32>
    tpu.vector_store %arg6[%c20_40, %c0_41], %41 {strides = array<i32>} : memref<36x256xf32, #tpu.memory_space<vmem>>, vector<4x256xf32>,
    %c241_i32_42 = arith.constant 241 : i32
    %43 = tpu.dynamic_rotate %31 by %c241_i32_42 dim 1 : vector<4x256xf32>, i32 -> vector<4x256xf32>
    %c24_43 = arith.constant 24 : index
    %c0_44 = arith.constant 0 : index
    %44 = vector.load %arg6[%c24_43, %c0_44] : memref<36x256xf32, #tpu.memory_space<vmem>>, vector<4x256xf32>
    tpu.vector_store %arg6[%c24_43, %c0_44], %43 {strides = array<i32>} : memref<36x256xf32, #tpu.memory_space<vmem>>, vector<4x256xf32>,
    %c240_i32_45 = arith.constant 240 : i32
    %45 = tpu.dynamic_rotate %31 by %c240_i32_45 dim 1 : vector<4x256xf32>, i32 -> vector<4x256xf32>
    %c28_46 = arith.constant 28 : index
    %c0_47 = arith.constant 0 : index
    %46 = vector.load %arg6[%c28_46, %c0_47] : memref<36x256xf32, #tpu.memory_space<vmem>>, vector<4x256xf32>
    tpu.vector_store %arg6[%c28_46, %c0_47], %45 {strides = array<i32>} : memref<36x256xf32, #tpu.memory_space<vmem>>, vector<4x256xf32>,
    %c239_i32_48 = arith.constant 239 : i32
    %47 = tpu.dynamic_rotate %31 by %c239_i32_48 dim 1 : vector<4x256xf32>, i32 -> vector<4x256xf32>
    %c32_49 = arith.constant 32 : index
    %c0_50 = arith.constant 0 : index
    %48 = vector.load %arg6[%c32_49, %c0_50] : memref<36x256xf32, #tpu.memory_space<vmem>>, vector<4x256xf32>
    tpu.vector_store %arg6[%c32_49, %c0_50], %47 {strides = array<i32>} : memref<36x256xf32, #tpu.memory_space<vmem>>, vector<4x256xf32>,
    %c0_51 = arith.constant 0 : index
    %c0_52 = arith.constant 0 : index
    %49 = vector.load %arg6[%c0_51, %c0_52] : memref<36x256xf32, #tpu.memory_space<vmem>>, vector<36x256xf32>
    %50 = arith.mulf %49, %2 : vector<36x256xf32>
    %cst_53 = arith.constant dense<0.000000e+00> : vector<8x256xf32>
    %51 = tpu.matmul %0, %50, %cst_53 {dimension_numbers = #tpu.dot_dimension_numbers<[1], [0], [0], [1], [0, 0, 1, 1], [], []>} : vector<8x36xf32>, vector<36x256xf32>, vector<8x256xf32> -> vector<8x256xf32>
    %52 = vector.broadcast %1 : vector<8x1xf32> to vector<8x256xf32>
    %53 = arith.addf %51, %52 : vector<8x256xf32>
    %c1_54 = arith.constant 1 : index
    %c0_55 = arith.constant 0 : index
    %c0_56 = arith.constant 0 : index
    %54 = vector.load %arg5[%c1_54, %c0_55, %c0_56] : memref<2x8x256xf32, #tpu.memory_space<vmem>>, vector<1x8x256xf32>
    %55 = vector.shape_cast %54 : vector<1x8x256xf32> to vector<8x256xf32>
    %56 = vector.shape_cast %53 : vector<8x256xf32> to vector<1x8x256xf32>
    tpu.vector_store %arg5[%c1_54, %c0_55, %c0_56], %56 {strides = array<i32>} : memref<2x8x256xf32, #tpu.memory_space<vmem>>, vector<1x8x256xf32>,
    return
  }
  func.func @transform_0(%arg0: i32) -> (i32, i32, i32) {
    %c0_i32 = arith.constant 0 : i32
    %c0_i32_0 = arith.constant 0 : i32
    %c0_i32_1 = arith.constant 0 : i32
    return %arg0, %c0_i32, %c0_i32_0 : i32, i32, i32
  }
  func.func @transform_1(%arg0: i32) -> (i32, i32) {
    %c0_i32 = arith.constant 0 : i32
    %c0_i32_0 = arith.constant 0 : i32
    %c0_i32_1 = arith.constant 0 : i32
    return %c0_i32, %c0_i32_0 : i32, i32
  }
  func.func @transform_2(%arg0: i32) -> (i32, i32) {
    %c0_i32 = arith.constant 0 : i32
    %c0_i32_0 = arith.constant 0 : i32
    %c0_i32_1 = arith.constant 0 : i32
    return %c0_i32, %c0_i32_0 : i32, i32
  }
  func.func @transform_3(%arg0: i32) -> (i32, i32) {
    %c0_i32 = arith.constant 0 : i32
    %c0_i32_0 = arith.constant 0 : i32
    %c0_i32_1 = arith.constant 0 : i32
    return %c0_i32, %c0_i32_0 : i32, i32
  }
  func.func @transform_4(%arg0: i32) -> (i32, i32, i32) {
    %c0_i32 = arith.constant 0 : i32
    %c0_i32_0 = arith.constant 0 : i32
    %c0_i32_1 = arith.constant 0 : i32
    return %arg0, %c0_i32, %c0_i32_0 : i32, i32, i32
  }
}

</mosaic_0001>

<llo_original>
// kernel: tpu_custom_call.1
$region0: #{tpu_custom_call.1}
  #allocation0 [shape = 'u32[]', space=smem, size = 0x4, offset = 0x4, fixed_abs, tag = 'smem constant byte address 0x4 - core index']
  #allocation1 [shape = 'u32[144,128]{1,0:T(1,128)}', space=vmem, size = 0x12000, scoped, tag = 'internal scratch']
  #allocation2 [shape = 'f32[36,256]{1,0:T(8,128)}', space=vmem, size = 0xa000, scoped, tag = 'scratch operand']
  %s0 = inlined_call_operand.hbm [shape: f32[2,4,256], index: 0, kind: input, shape index: {}]
  %s1 = inlined_call_operand.vmem [shape: f32[8,36], index: 1, kind: input, shape index: {}]
  %s2 = inlined_call_operand.vmem [shape: f32[8,1], index: 2, kind: input, shape index: {}]
  %s3 = inlined_call_operand.hbm [shape: f32[36,256], index: 3, kind: input, shape index: {}]
  %s4 = inlined_call_operand.hbm [shape: f32[2,8,256], index: 4, kind: output, shape index: {}]
  %s5 = sld [smem:[#allocation0]]
  $region34: #{tpu_custom_call.1} parent=0
    _
  %s7 = ssub.s32 1, %s5
  %s8 = scalar_select 0, %s7, %s5
  $region1: #{tpu_custom_call.1} parent=0
    #allocation3 [shape = 'u8[8192]{0}', space=vmem, size = 0x2000, scoped, tag = 'input window, operand 0, single buffered']
    #allocation4 [shape = 's32[1]{0}', space=sflag, size = 0x4, scoped, tag = 'scoped memory for tpu_custom_call.1']
    #allocation5 [shape = 's32[1]{0}', space=sflag, size = 0x4, scoped, tag = 'scoped memory for tpu_custom_call.1']
    #allocation6 [shape = 'u8[40960]{0}', space=vmem, size = 0xa000, scoped, tag = 'input window, operand 3, single buffered']
    #allocation7 [shape = 's32[1]{0}', space=sflag, size = 0x4, scoped, tag = 'scoped memory for tpu_custom_call.1']
    #allocation8 [shape = 'u8[16384]{0}', space=vmem, size = 0x4000, scoped, tag = 'output window, operand 0, single buffered']
    %9 = vsyncpa [#allocation4], 0
    %10 = vsyncpa [#allocation7], 0
    %11 = vsyncpa [#allocation5], 0
    // Predicated region
    $region2: #{tpu_custom_call.1} parent=1 // pred_check
      _
    $region3: #{tpu_custom_call.1} parent=1 // pred_check_branch
      %13 = sbr.rel (0) target = $region5
    $region4: #{tpu_custom_call.1} parent=1 // pred_region
      %s15 = ssub.s32 256, 256
      %16 = vsyncadd [#allocation4], %s15
      %s17 = sshll.u32 [#allocation3], 4
      %s18 = int_to_ptr.vmem [resolvable:$true] %s17
      %23 = dma.hbm_to_vmem [thread:$0]  %s0, 256, %s18, [#allocation4], 128, 128, 8
    $region5: #{tpu_custom_call.1} parent=1 // pred_fallthru
      _
    // Predicated region
    $region6: #{tpu_custom_call.1} parent=1 // pred_check
      _
    $region7: #{tpu_custom_call.1} parent=1 // pred_check_branch
      %25 = sbr.rel (0) target = $region9
    $region8: #{tpu_custom_call.1} parent=1 // pred_region
      _
    $region9: #{tpu_custom_call.1} parent=1 // pred_fallthru
      _
    // Predicated region
    $region10: #{tpu_custom_call.1} parent=1 // pred_check
      _
    $region11: #{tpu_custom_call.1} parent=1 // pred_check_branch
      %27 = sbr.rel (0) target = $region13
    $region12: #{tpu_custom_call.1} parent=1 // pred_region
      _
    $region13: #{tpu_custom_call.1} parent=1 // pred_fallthru
      _
    // Predicated region
    $region14: #{tpu_custom_call.1} parent=1 // pred_check
      _
    $region15: #{tpu_custom_call.1} parent=1 // pred_check_branch
      %29 = sbr.rel (0) target = $region17
    $region16: #{tpu_custom_call.1} parent=1 // pred_region
      %s31 = ssub.s32 1280, 1280
      %32 = vsyncadd [#allocation7], %s31
      %s33 = sshll.u32 [#allocation6], 4
      %s34 = int_to_ptr.vmem [resolvable:$true] %s33
      %39 = dma.hbm_to_vmem [thread:$0]  %s3, 1280, %s34, [#allocation7], 256, 256, 16
    $region17: #{tpu_custom_call.1} parent=1 // pred_fallthru
      _
    // Predicated region
    $region18: #{tpu_custom_call.1} parent=1 // pred_check
      _
    $region19: #{tpu_custom_call.1} parent=1 // pred_check_branch
      %41 = sbr.rel (0) target = $region21
    $region20: #{tpu_custom_call.1} parent=1 // pred_region
      %42 = dma.done [#allocation4], 256
    $region21: #{tpu_custom_call.1} parent=1 // pred_fallthru
      _
    // Predicated region
    $region22: #{tpu_custom_call.1} parent=1 // pred_check
      _
    $region23: #{tpu_custom_call.1} parent=1 // pred_check_branch
      %44 = sbr.rel (0) target = $region25
    $region24: #{tpu_custom_call.1} parent=1 // pred_region
      %45 = dma.done [#allocation7], 1280
    $region25: #{tpu_custom_call.1} parent=1 // pred_fallthru
      _
    %v46 = vld [vmem:[%s1] sm:$0xff]
    %v47 = vld [vmem:[%s2] sm:$0xff]
    %v48 = vld [vmem:[#allocation6] sm:$0xff]
    %v49 = vld [vmem:[#allocation6 + $0x8] sm:$0xff]
    %v50 = vld [vmem:[#allocation6 + $0x10] sm:$0xff]
    %v51 = vld [vmem:[#allocation6 + $0x18] sm:$0xff]
    %v52 = vld [vmem:[#allocation6 + $0x20] sm:$0xff]
    %v53 = vld [vmem:[#allocation6 + $0x28] sm:$0xff]
    %v54 = vld [vmem:[#allocation6 + $0x30] sm:$0xff]
    %v55 = vld [vmem:[#allocation6 + $0x38] sm:$0xff]
    %v56 = vld [vmem:[#allocation6 + $0x40] sm:$0xf]
    %v57 = vld [vmem:[#allocation6 + $0x48] sm:$0xf]
    %v58 = vld [vmem:[#allocation3] sm:$0xff]
    %v60 = vcombine.high %v58, %v58
    %62 = vrot.lane.b32.xlu0 %v58, 17
    %v63 = vpop.permute.xlu0 %62
    %64 = vrot.lane.b32.xlu0 %v60, 17
    %v65 = vpop.permute.xlu0 %64
    %v66 = vlaneseq
    %v67 = vand.u32 %v66, 127
    %vm68 = vcmp.lt.s32.totalorder %v67, 17
    %v69 = vsel %vm68, %v63, %v65
    %v70 = vsel %vm68, %v65, %v63
    %71 = vst [vmem:[#allocation2] sm:$0xf] %v70
    %72 = vst [vmem:[#allocation2 + $0x8] sm:$0xf] %v69
    %73 = vrot.lane.b32.xlu0 %v58, 16
    %v74 = vpop.permute.xlu0 %73
    %75 = vrot.lane.b32.xlu0 %v60, 16
    %v76 = vpop.permute.xlu0 %75
    %vm77 = vcmp.lt.s32.totalorder %v67, 16
    %v78 = vsel %vm77, %v74, %v76
    %v79 = vsel %vm77, %v76, %v74
    %v82 = vrot.slane %v79, 4
    %v83 = vrot.slane %v78, 4
    %86 = vst [vmem:[#allocation2] sm:$0xf0] %v82
    %87 = vst [vmem:[#allocation2 + $0x8] sm:$0xf0] %v83
    %88 = vrot.lane.b32.xlu0 %v58, 15
    %v89 = vpop.permute.xlu0 %88
    %90 = vrot.lane.b32.xlu0 %v60, 15
    %v91 = vpop.permute.xlu0 %90
    %vm92 = vcmp.lt.s32.totalorder %v67, 15
    %v93 = vsel %vm92, %v89, %v91
    %v94 = vsel %vm92, %v91, %v89
    %95 = vst [vmem:[#allocation2 + $0x10] sm:$0xf] %v94
    %96 = vst [vmem:[#allocation2 + $0x18] sm:$0xf] %v93
    %97 = vrot.lane.b32.xlu0 %v58, 1
    %v98 = vpop.permute.xlu0 %97
    %99 = vrot.lane.b32.xlu0 %v60, 1
    %v100 = vpop.permute.xlu0 %99
    %vm101 = vcmp.lt.s32.totalorder %v67, 1
    %v102 = vsel %vm101, %v98, %v100
    %v103 = vsel %vm101, %v100, %v98
    %v106 = vrot.slane %v103, 4
    %v107 = vrot.slane %v102, 4
    %110 = vst [vmem:[#allocation2 + $0x10] sm:$0xf0] %v106
    %111 = vst [vmem:[#allocation2 + $0x18] sm:$0xf0] %v107
    %112 = vst [vmem:[#allocation2 + $0x20] sm:$0xf] %v58
    %113 = vst [vmem:[#allocation2 + $0x28] sm:$0xf] %v60
    %114 = vrot.lane.b32.xlu0 %v58, 127
    %v115 = vpop.permute.xlu0 %114
    %116 = vrot.lane.b32.xlu0 %v60, 127
    %v117 = vpop.permute.xlu0 %116
    %vm118 = vcmp.lt.s32.totalorder %v67, 127
    %v119 = vsel %vm118, %v115, %v117
    %v120 = vsel %vm118, %v117, %v115
    %v123 = vrot.slane %v119, 4
    %v124 = vrot.slane %v120, 4
    %127 = vst [vmem:[#allocation2 + $0x20] sm:$0xf0] %v123
    %128 = vst [vmem:[#allocation2 + $0x28] sm:$0xf0] %v124
    %129 = vrot.lane.b32.xlu0 %v58, 113
    %v130 = vpop.permute.xlu0 %129
    %131 = vrot.lane.b32.xlu0 %v60, 113
    %v132 = vpop.permute.xlu0 %131
    %vm133 = vcmp.lt.s32.totalorder %v67, 113
    %v134 = vsel %vm133, %v130, %v132
    %v135 = vsel %vm133, %v132, %v130
    %136 = vst [vmem:[#allocation2 + $0x30] sm:$0xf] %v134
    %137 = vst [vmem:[#allocation2 + $0x38] sm:$0xf] %v135
    %138 = vrot.lane.b32.xlu0 %v58, 112
    %v139 = vpop.permute.xlu0 %138
    %140 = vrot.lane.b32.xlu0 %v60, 112
    %v141 = vpop.permute.xlu0 %140
    %vm142 = vcmp.lt.s32.totalorder %v67, 112
    %v143 = vsel %vm142, %v139, %v141
    %v144 = vsel %vm142, %v141, %v139
    %v147 = vrot.slane %v143, 4
    %v148 = vrot.slane %v144, 4
    %151 = vst [vmem:[#allocation2 + $0x30] sm:$0xf0] %v147
    %152 = vst [vmem:[#allocation2 + $0x38] sm:$0xf0] %v148
    %153 = vrot.lane.b32.xlu0 %v58, 111
    %v154 = vpop.permute.xlu0 %153
    %155 = vrot.lane.b32.xlu0 %v60, 111
    %v156 = vpop.permute.xlu0 %155
    %vm157 = vcmp.lt.s32.totalorder %v67, 111
    %v158 = vsel %vm157, %v154, %v156
    %v159 = vsel %vm157, %v156, %v154
    %160 = vst [vmem:[#allocation2 + $0x40] sm:$0xf] %v158
    %161 = vst [vmem:[#allocation2 + $0x48] sm:$0xf] %v159
    %v162 = vld [vmem:[#allocation2] sm:$0xff]
    %v163 = vld [vmem:[#allocation2 + $0x8] sm:$0xff]
    %v164 = vld [vmem:[#allocation2 + $0x10] sm:$0xff]
    %v165 = vld [vmem:[#allocation2 + $0x18] sm:$0xff]
    %v166 = vld [vmem:[#allocation2 + $0x20] sm:$0xff]
    %v167 = vld [vmem:[#allocation2 + $0x28] sm:$0xff]
    %v168 = vld [vmem:[#allocation2 + $0x30] sm:$0xff]
    %v169 = vld [vmem:[#allocation2 + $0x38] sm:$0xff]
    %v170 = vld [vmem:[#allocation2 + $0x40] sm:$0xf]
    %v171 = vld [vmem:[#allocation2 + $0x48] sm:$0xf]
    %v172 = vmul.f32 %v162, %v48
    %v173 = vmul.f32 %v163, %v49
    %v174 = vmul.f32 %v164, %v50
    %v175 = vmul.f32 %v165, %v51
    %v176 = vmul.f32 %v166, %v52
    %v177 = vmul.f32 %v167, %v53
    %v178 = vmul.f32 %v168, %v54
    %v179 = vmul.f32 %v169, %v55
    %v180 = vmul.f32 %v170, %v56
    %v181 = vmul.f32 %v171, %v57
    %183 = vset.pattern.permute.xlu0 0
    %184 = vperm.xlu0 %183, %v47
    %v185 = vpop.permute.xlu0 %184
    %vm187 = vcmask 293888
    %v189 = vsel %vm187, %v46, 0
    %vm191 = vcmask 1043456
    %v193 = vsel %vm191, %v180, 0
    %v196 = vsel %vm191, %v181, 0
    %198 = vmatprep.subr.mxu0 %v173
    %199 = vmatpush1.msra.mxu0 %v172
    %200 = vmatprep.subr.mxu0 %v175
    %201 = vmatpush1.msra.mxu0 %v174
    %202 = vmatprep.subr.mxu0 %v177
    %203 = vmatpush1.msra.mxu0 %v176
    %204 = vmatprep.subr.mxu0 %v179
    %205 = vmatpush1.msra.mxu0 %v178
    %206 = vmatprep.subr.mxu0 %v196
    %207 = vmatpush1.msra.mxu0 %v193
    %208 = vmatprep.subr.mxu0 0.0
    %209 = vmatpush1.msra.mxu0 0.0
    %210 = vmatprep.subr.mxu0 0.0
    %211 = vmatpush1.msra.mxu0 0.0
    %212 = vmatprep.subr.mxu0 0.0
    %213 = vmatpush1.msra.mxu0 0.0
    %214 = vmatprep.subr.mxu0 0.0
    %215 = vmatpush1.msra.mxu0 0.0
    %216 = vmatprep.subr.mxu0 0.0
    %217 = vmatpush1.msra.mxu0 0.0
    %218 = vmatprep.subr.mxu0 0.0
    %219 = vmatpush1.msra.mxu0 0.0
    %220 = vmatprep.subr.mxu0 0.0
    %221 = vmatpush1.msra.mxu0 0.0
    %222 = vmatprep.subr.mxu0 0.0
    %223 = vmatpush1.msra.mxu0 0.0
    %224 = vmatprep.subr.mxu0 0.0
    %225 = vmatpush1.msra.mxu0 0.0
    %226 = vmatprep.subr.mxu0 0.0
    %227 = vmatpush1.msra.mxu0 0.0
    %228 = vmatprep.subr.mxu0 0.0
    %229 = vmatpush1.msra.mxu0 0.0
    %230 = vmatprep.subr.mxu0 0.0
    %231 = vmatpush1.msra.mxu0 0.0
    %232 = vmatprep.subr.mxu0 0.0
    %233 = vmatpush1.msra.mxu0 0.0
    %234 = vmatprep.subr.mxu0 0.0
    %235 = vmatpush1.msra.mxu0 0.0
    %236 = vmatprep.subr.mxu0 0.0
    %237 = vmatpush1.msra.mxu0 0.0
    %238 = vmatprep.subr.mxu0 0.0
    %239 = vmatpush1.msra.mxu0 0.0
    %240 = vmatprep.subr.mxu0 0.0
    %241 = vmatpush1.msra.mxu0 0.0
    %242 = vmatprep.subr.mxu0 0.0
    %243 = vmatpush1.msra.mxu0 0.0
    %244 = vmatprep.subr.mxu0 0.0
    %245 = vmatpush1.msra.mxu0 0.0
    %246 = vmatprep.subr.mxu0 0.0
    %247 = vmatpush1.msra.mxu0 0.0
    %248 = vmatprep.subr.mxu0 0.0
    %249 = vmatpush1.msra.mxu0 0.0
    %250 = vmatprep.subr.mxu0 0.0
    %251 = vmatpush1.msra.mxu0 0.0
    %252 = vmatprep.subr.mxu0 0.0
    %253 = vmatpush1.msra.mxu0 0.0
    %254 = vmatprep.subr.mxu0 0.0
    %255 = vmatpush1.msra.mxu0 0.0
    %256 = vmatprep.subr.mxu0 0.0
    %257 = vmatpush1.msra.mxu0 0.0
    %258 = vmatprep.subr.mxu0 0.0
    %259 = vmatpush1.msra.mxu0 0.0
    %260 = vmatprep.subr.mxu0 0.0
    %261 = vmatpush1.msra.mxu0 0.0
    %262 = vmatprep.mubr.f32.mxu0 0.0
    %263 = vmatmul.mubr.f32.gmra.mrb[0].mxu0 %v189
    %v264 = vpop.f32.mrb[0].mxu0
    %v265 = vadd.f32 %v185, %v264
    %v266 = vpop.f32.mrb[0].mxu0
    %v267 = vadd.f32 %v185, %v266
    %268 = vdwg.mxu0
    %269 = vst [vmem:[#allocation8] sm:$0xff] %v265
    %270 = vst [vmem:[#allocation8 + $0x8] sm:$0xff] %v267
    %s271 = scalar_lea.vmem [#allocation3], 8
    %v272 = vld [vmem:[%s271] sm:$0xff]
    %v274 = vcombine.high %v272, %v272
    %276 = vrot.lane.b32.xlu0 %v272, 17
    %v277 = vpop.permute.xlu0 %276
    %278 = vrot.lane.b32.xlu0 %v274, 17
    %v279 = vpop.permute.xlu0 %278
    %v280 = vsel %vm68, %v277, %v279
    %v281 = vsel %vm68, %v279, %v277
    %282 = vst [vmem:[#allocation2] sm:$0xf] %v281
    %283 = vst [vmem:[#allocation2 + $0x8] sm:$0xf] %v280
    %284 = vrot.lane.b32.xlu0 %v272, 16
    %v285 = vpop.permute.xlu0 %284
    %286 = vrot.lane.b32.xlu0 %v274, 16
    %v287 = vpop.permute.xlu0 %286
    %v288 = vsel %vm77, %v285, %v287
    %v289 = vsel %vm77, %v287, %v285
    %v292 = vrot.slane %v289, 4
    %v293 = vrot.slane %v288, 4
    %296 = vst [vmem:[#allocation2] sm:$0xf0] %v292
    %297 = vst [vmem:[#allocation2 + $0x8] sm:$0xf0] %v293
    %298 = vrot.lane.b32.xlu0 %v272, 15
    %v299 = vpop.permute.xlu0 %298
    %300 = vrot.lane.b32.xlu0 %v274, 15
    %v301 = vpop.permute.xlu0 %300
    %v302 = vsel %vm92, %v299, %v301
    %v303 = vsel %vm92, %v301, %v299
    %304 = vst [vmem:[#allocation2 + $0x10] sm:$0xf] %v303
    %305 = vst [vmem:[#allocation2 + $0x18] sm:$0xf] %v302
    %306 = vrot.lane.b32.xlu0 %v272, 1
    %v307 = vpop.permute.xlu0 %306
    %308 = vrot.lane.b32.xlu0 %v274, 1
    %v309 = vpop.permute.xlu0 %308
    %v310 = vsel %vm101, %v307, %v309
    %v311 = vsel %vm101, %v309, %v307
    %v314 = vrot.slane %v311, 4
    %v315 = vrot.slane %v310, 4
    %318 = vst [vmem:[#allocation2 + $0x10] sm:$0xf0] %v314
    %319 = vst [vmem:[#allocation2 + $0x18] sm:$0xf0] %v315
    %320 = vst [vmem:[#allocation2 + $0x20] sm:$0xf] %v272
    %321 = vst [vmem:[#allocation2 + $0x28] sm:$0xf] %v274
    %322 = vrot.lane.b32.xlu0 %v272, 127
    %v323 = vpop.permute.xlu0 %322
    %324 = vrot.lane.b32.xlu0 %v274, 127
    %v325 = vpop.permute.xlu0 %324
    %v326 = vsel %vm118, %v323, %v325
    %v327 = vsel %vm118, %v325, %v323
    %v330 = vrot.slane %v326, 4
    %v331 = vrot.slane %v327, 4
    %334 = vst [vmem:[#allocation2 + $0x20] sm:$0xf0] %v330
    %335 = vst [vmem:[#allocation2 + $0x28] sm:$0xf0] %v331
    %336 = vrot.lane.b32.xlu0 %v272, 113
    %v337 = vpop.permute.xlu0 %336
    %338 = vrot.lane.b32.xlu0 %v274, 113
    %v339 = vpop.permute.xlu0 %338
    %v340 = vsel %vm133, %v337, %v339
    %v341 = vsel %vm133, %v339, %v337
    %342 = vst [vmem:[#allocation2 + $0x30] sm:$0xf] %v340
    %343 = vst [vmem:[#allocation2 + $0x38] sm:$0xf] %v341
    %344 = vrot.lane.b32.xlu0 %v272, 112
    %v345 = vpop.permute.xlu0 %344
    %346 = vrot.lane.b32.xlu0 %v274, 112
    %v347 = vpop.permute.xlu0 %346
    %v348 = vsel %vm142, %v345, %v347
    %v349 = vsel %vm142, %v347, %v345
    %v352 = vrot.slane %v348, 4
    %v353 = vrot.slane %v349, 4
    %356 = vst [vmem:[#allocation2 + $0x30] sm:$0xf0] %v352
    %357 = vst [vmem:[#allocation2 + $0x38] sm:$0xf0] %v353
    %358 = vrot.lane.b32.xlu0 %v272, 111
    %v359 = vpop.permute.xlu0 %358
    %360 = vrot.lane.b32.xlu0 %v274, 111
    %v361 = vpop.permute.xlu0 %360
    %v362 = vsel %vm157, %v359, %v361
    %v363 = vsel %vm157, %v361, %v359
    %364 = vst [vmem:[#allocation2 + $0x40] sm:$0xf] %v362
    %365 = vst [vmem:[#allocation2 + $0x48] sm:$0xf] %v363
    %v366 = vld [vmem:[#allocation2] sm:$0xff]
    %v367 = vld [vmem:[#allocation2 + $0x8] sm:$0xff]
    %v368 = vld [vmem:[#allocation2 + $0x10] sm:$0xff]
    %v369 = vld [vmem:[#allocation2 + $0x18] sm:$0xff]
    %v370 = vld [vmem:[#allocation2 + $0x20] sm:$0xff]
    %v371 = vld [vmem:[#allocation2 + $0x28] sm:$0xff]
    %v372 = vld [vmem:[#allocation2 + $0x30] sm:$0xff]
    %v373 = vld [vmem:[#allocation2 + $0x38] sm:$0xff]
    %v374 = vld [vmem:[#allocation2 + $0x40] sm:$0xf]
    %v375 = vld [vmem:[#allocation2 + $0x48] sm:$0xf]
    %v376 = vmul.f32 %v366, %v48
    %v377 = vmul.f32 %v367, %v49
    %v378 = vmul.f32 %v368, %v50
    %v379 = vmul.f32 %v369, %v51
    %v380 = vmul.f32 %v370, %v52
    %v381 = vmul.f32 %v371, %v53
    %v382 = vmul.f32 %v372, %v54
    %v383 = vmul.f32 %v373, %v55
    %v384 = vmul.f32 %v374, %v56
    %v385 = vmul.f32 %v375, %v57
    %v387 = vsel %vm191, %v384, 0
    %v390 = vsel %vm191, %v385, 0
    %392 = vmatprep.subr.mxu0 %v377
    %393 = vmatpush1.msra.mxu0 %v376
    %394 = vmatprep.subr.mxu0 %v379
    %395 = vmatpush1.msra.mxu0 %v378
    %396 = vmatprep.subr.mxu0 %v381
    %397 = vmatpush1.msra.mxu0 %v380
    %398 = vmatprep.subr.mxu0 %v383
    %399 = vmatpush1.msra.mxu0 %v382
    %400 = vmatprep.subr.mxu0 %v390
    %401 = vmatpush1.msra.mxu0 %v387
    %402 = vmatprep.subr.mxu0 0.0
    %403 = vmatpush1.msra.mxu0 0.0
    %404 = vmatprep.subr.mxu0 0.0
    %405 = vmatpush1.msra.mxu0 0.0
    %406 = vmatprep.subr.mxu0 0.0
    %407 = vmatpush1.msra.mxu0 0.0
    %408 = vmatprep.subr.mxu0 0.0
    %409 = vmatpush1.msra.mxu0 0.0
    %410 = vmatprep.subr.mxu0 0.0
    %411 = vmatpush1.msra.mxu0 0.0
    %412 = vmatprep.subr.mxu0 0.0
    %413 = vmatpush1.msra.mxu0 0.0
    %414 = vmatprep.subr.mxu0 0.0
    %415 = vmatpush1.msra.mxu0 0.0
    %416 = vmatprep.subr.mxu0 0.0
    %417 = vmatpush1.msra.mxu0 0.0
    %418 = vmatprep.subr.mxu0 0.0
    %419 = vmatpush1.msra.mxu0 0.0
    %420 = vmatprep.subr.mxu0 0.0
    %421 = vmatpush1.msra.mxu0 0.0
    %422 = vmatprep.subr.mxu0 0.0
    %423 = vmatpush1.msra.mxu0 0.0
    %424 = vmatprep.subr.mxu0 0.0
    %425 = vmatpush1.msra.mxu0 0.0
    %426 = vmatprep.subr.mxu0 0.0
    %427 = vmatpush1.msra.mxu0 0.0
    %428 = vmatprep.subr.mxu0 0.0
    %429 = vmatpush1.msra.mxu0 0.0
    %430 = vmatprep.subr.mxu0 0.0
    %431 = vmatpush1.msra.mxu0 0.0
    %432 = vmatprep.subr.mxu0 0.0
    %433 = vmatpush1.msra.mxu0 0.0
    %434 = vmatprep.subr.mxu0 0.0
    %435 = vmatpush1.msra.mxu0 0.0
    %436 = vmatprep.subr.mxu0 0.0
    %437 = vmatpush1.msra.mxu0 0.0
    %438 = vmatprep.subr.mxu0 0.0
    %439 = vmatpush1.msra.mxu0 0.0
    %440 = vmatprep.subr.mxu0 0.0
    %441 = vmatpush1.msra.mxu0 0.0
    %442 = vmatprep.subr.mxu0 0.0
    %443 = vmatpush1.msra.mxu0 0.0
    %444 = vmatprep.subr.mxu0 0.0
    %445 = vmatpush1.msra.mxu0 0.0
    %446 = vmatprep.subr.mxu0 0.0
    %447 = vmatpush1.msra.mxu0 0.0
    %448 = vmatprep.subr.mxu0 0.0
    %449 = vmatpush1.msra.mxu0 0.0
    %450 = vmatprep.subr.mxu0 0.0
    %451 = vmatpush1.msra.mxu0 0.0
    %452 = vmatprep.subr.mxu0 0.0
    %453 = vmatpush1.msra.mxu0 0.0
    %454 = vmatprep.subr.mxu0 0.0
    %455 = vmatpush1.msra.mxu0 0.0
    %456 = vmatprep.mubr.f32.mxu0 0.0
    %457 = vmatmul.mubr.f32.gmra.mrb[0].mxu0 %v189
    %v458 = vpop.f32.mrb[0].mxu0
    %v459 = vadd.f32 %v185, %v458
    %v460 = vpop.f32.mrb[0].mxu0
    %v461 = vadd.f32 %v185, %v460
    %462 = vdwg.mxu0
    %s463 = scalar_lea.vmem [#allocation8], 16
    %464 = vst [vmem:[%s463] sm:$0xff] %v459
    %465 = vst [vmem:[%s463 + $0x8] sm:$0xff] %v461
    // Predicated region
    $region26: #{tpu_custom_call.1} parent=1 // pred_check
      _
    $region27: #{tpu_custom_call.1} parent=1 // pred_check_branch
      %467 = sbr.rel (0) target = $region29
    $region28: #{tpu_custom_call.1} parent=1 // pred_region
      %s469 = ssub.s32 512, 512
      %470 = vsyncadd [#allocation5], %s469
      %s471 = sshll.u32 [#allocation8], 4
      %s472 = int_to_ptr.vmem [resolvable:$true] %s471
      %477 = dma.vmem_to_hbm [thread:$0]  %s472, 512, %s4, [#allocation5], 256, 256, 16
    $region29: #{tpu_custom_call.1} parent=1 // pred_fallthru
      _
    // Predicated region
    $region30: #{tpu_custom_call.1} parent=1 // pred_check
      _
    $region31: #{tpu_custom_call.1} parent=1 // pred_check_branch
      %479 = sbr.rel (0) target = $region33
    $region32: #{tpu_custom_call.1} parent=1 // pred_region
      %480 = dma.done [#allocation5], 512
    $region33: #{tpu_custom_call.1} parent=1 // pred_fallthru
      _
    %481 = vsyncpa [#allocation4], 1
    %482 = vsyncpa [#allocation7], 1
    %483 = vsyncpa [#allocation5], 1

</llo_original>
